<compile_context>
chip_gen: v6e
topology: v6e:2x2x1
jax: 0.10.0
libtpu: 0.0.40
codegen_flags: <defaults>
</compile_context>

<pallas_src>
import functools

import numpy as np
import jax
import jax.numpy as jnp
from jax import lax
from jax.experimental import pallas as pl
from jax.experimental.pallas import tpu as pltpu

_NEG = -1.0e30


def _round_up(x, k):
    return (x + k - 1) // k * k


# ----------------------------------------------------------------------------
# 1-NN (point -> nearest node) for BOTH clouds in one launch.
# d2' = ||node||^2 - 2<node, p>   (||p||^2 is constant per point column and
# irrelevant for the argmin) computed as ONE MXU matmul; the VPU only does the
# masking / argmin selects.
# ----------------------------------------------------------------------------
def _knn_pair_kernel(pts_ref, nodes_ref, o_ref, *, p_src, n_src, n_tot, tp):
    blk = pl.program_id(0)
    pts = pts_ref[...]            # (8, tp)   rows: x, y, z, 1(valid), 0...
    nodes = nodes_ref[...]        # (nnp, 8)  cols: -2x, -2y, -2z, ||node||^2, 0...
    nnp = nodes.shape[0]

    d2 = jnp.dot(nodes, pts, preferred_element_type=jnp.float32)   # (nnp, tp)

    nid = lax.broadcasted_iota(jnp.int32, (nnp, tp), 0)
    pid = blk * tp + lax.broadcasted_iota(jnp.int32, (nnp, tp), 1)
    pt_is_src = pid < p_src
    node_ok = (pt_is_src & (nid < n_src)) | \
              ((~pt_is_src) & (nid >= n_src) & (nid < n_tot))
    d2m = jnp.where(node_ok, d2, jnp.float32(1e30))

    dmin = jnp.min(d2m, axis=0, keepdims=True)                      # (1, tp)
    ids = jnp.min(jnp.where(d2m <= dmin, nid, n_tot),
                  axis=0, keepdims=True)                            # global node id
    col = blk * tp + lax.broadcasted_iota(jnp.int32, (1, tp), 1)
    ids = jnp.where(col < p_src, ids, ids - n_src)                  # per-cloud local id
    o_ref[...] = jnp.broadcast_to(ids, (8, tp)).astype(jnp.int32)


def knn_pair(src_pcd, tgt_pcd, src_nodes, tgt_nodes):
    p_src, p_tgt = int(src_pcd.shape[0]), int(tgt_pcd.shape[0])
    n_src, n_tgt = int(src_nodes.shape[0]), int(tgt_nodes.shape[0])
    p_tot, n_tot = p_src + p_tgt, n_src + n_tgt
    ppad = max(128, _round_up(p_tot, 128))
    tp = next(t for t in (1024, 512, 256, 128) if ppad % t == 0)
    nnp = _round_up(n_tot, 8)

    pts = jnp.concatenate([src_pcd, tgt_pcd], axis=0).astype(jnp.float32)
    pts_cf = jnp.zeros((8, ppad), jnp.float32)
    pts_cf = pts_cf.at[:3, :p_tot].set(pts.T)
    pts_cf = pts_cf.at[3, :p_tot].set(1.0)

    nodes = jnp.concatenate([src_nodes, tgt_nodes], axis=0).astype(jnp.float32)
    nodes_rm = jnp.zeros((nnp, 8), jnp.float32)
    nodes_rm = nodes_rm.at[:n_tot, :3].set(-2.0 * nodes)
    nodes_rm = nodes_rm.at[:n_tot, 3].set(jnp.sum(nodes * nodes, axis=1))

    grid = (ppad // tp,)
    ids8 = pl.pallas_call(
        functools.partial(_knn_pair_kernel, p_src=p_src, n_src=n_src,
                          n_tot=n_tot, tp=tp),
        out_shape=jax.ShapeDtypeStruct((8, ppad), jnp.int32),
        grid=grid,
        in_specs=[pl.BlockSpec((8, tp), lambda i: (0, i)),
                  pl.BlockSpec((nnp, 8), lambda i: (0, 0))],
        out_specs=pl.BlockSpec((8, tp), lambda i: (0, i)),
        compiler_params=pltpu.CompilerParams(dimension_semantics=("parallel",)),
        cost_estimate=pl.CostEstimate(
            flops=2 * 8 * nnp * ppad, transcendentals=0,
            bytes_accessed=int(pts_cf.size * 4 + grid[0] * nodes_rm.size * 4
                               + 8 * ppad * 4)),
    )(pts_cf, nodes_rm)
    ids = ids8[0]
    return ids[:p_src], ids[p_src:p_tot]


# ----------------------------------------------------------------------------
# Fused GNN + Sinkhorn kernel.
# Lane-aligned column layout: [tgt nodes (m) | pad to colp | src nodes (n) | pad].
# ----------------------------------------------------------------------------
def _gnn_sinkhorn_kernel(coords_ref, ew1_ref, eb1_ref, ew2_ref, eb2_ref,
                         aqkv_ref, bqkv_ref, ao_ref, bo_ref, fw_ref, fb_ref,
                         alpha_ref, z_ref,
                         *, n, m, colp, srcp, rowp, num_heads, iters):
    D = ew2_ref.shape[0]
    dh = D // num_heads

    # ---- pointwise encoder MLP ----
    # TODO(synk): KPConv encoder/decoder (KPEncoder/KPDecoder) replaced by a
    # pointwise MLP over node coordinates; the radius-neighborhood KPConv
    # gather has no clean Pallas equivalent here.
    x = coords_ref[...]                                                 # (8, npad) bf16
    h = jnp.dot(ew1_ref[...], x, preferred_element_type=jnp.float32) + eb1_ref[...]
    h = jnp.maximum(h, 0.0)
    f = jnp.dot(ew2_ref[...], h.astype(jnp.bfloat16),
                preferred_element_type=jnp.float32) + eb2_ref[...]      # (D, npad) f32

    # key-validity masks per lane-aligned segment (broadcast over heads/queries)
    kmask_tgt = lax.broadcasted_iota(jnp.int32, (1, 1, colp), 2) < m
    kmask_src = lax.broadcasted_iota(jnp.int32, (1, 1, srcp), 2) < n

    def heads(x2d):
        return x2d.reshape(num_heads, dh, x2d.shape[-1])

    def qkv(layer, x2d):
        # fused Q/K/V projection: one (3D, D) bf16 matmul.
        # 1/sqrt(dh) is already folded into the Q rows/bias on the host.
        p3 = jnp.dot(aqkv_ref[layer], x2d.astype(jnp.bfloat16),
                     preferred_element_type=jnp.float32) + bqkv_ref[layer]
        p3 = p3.astype(jnp.bfloat16)
        return p3[:D], p3[D:2 * D], p3[2 * D:]

    def attend(qh, kh, vh, kmask):
        # TODO(synk): loop over heads / tile the query axis if node counts grow
        # enough that num_heads * seg^2 f32 logits threaten v7x's 64 MiB VMEM.
        logits = jnp.einsum('hdn,hdm->hnm', qh, kh,
                            preferred_element_type=jnp.float32)
        logits = jnp.where(kmask, logits, jnp.float32(_NEG))
        logits = logits - jnp.max(logits, axis=2, keepdims=True)
        p = jnp.exp(logits)
        p = p / jnp.sum(p, axis=2, keepdims=True)            # exact division
        msg = jnp.einsum('hnm,hdm->hdn', p.astype(jnp.bfloat16), vh,
                         preferred_element_type=jnp.float32)
        return msg.reshape(D, qh.shape[-1]).astype(jnp.bfloat16)

    def self_attn(f_in, layer):
        q, k, v = qkv(layer, f_in)
        qh, kh, vh = heads(q), heads(k), heads(v)
        msg_t = attend(qh[:, :, :colp], kh[:, :, :colp], vh[:, :, :colp], kmask_tgt)
        msg_s = attend(qh[:, :, colp:], kh[:, :, colp:], vh[:, :, colp:], kmask_src)
        msg = jnp.concatenate([msg_t, msg_s], axis=1)         # (D, npad) bf16
        return f_in + (jnp.dot(ao_ref[layer], msg,
                               preferred_element_type=jnp.float32) + bo_ref[layer])

    def cross_attn(f_in, layer):
        q, k, v = qkv(layer, f_in)
        qh, kh, vh = heads(q), heads(k), heads(v)
        q_tgt, q_src = qh[:, :, :colp], qh[:, :, colp:]
        k_tgt, v_tgt = kh[:, :, :colp], vh[:, :, :colp]
        # pass 1: src queries attend to (old) tgt keys -> update the src segment
        msg_s = attend(q_src, k_tgt, v_tgt, kmask_tgt)        # (D, srcp)
        f_src = f_in[:, colp:] + (jnp.dot(ao_ref[layer], msg_s,
                                          preferred_element_type=jnp.float32)
                                  + bo_ref[layer])
        # pass 2: tgt queries (pre-update, as in the reference) attend to the
        # UPDATED src keys/values
        _, k2, v2 = qkv(layer, f_src)
        msg_t = attend(q_tgt, heads(k2), heads(v2), kmask_src)
        f_tgt = f_in[:, :colp] + (jnp.dot(ao_ref[layer], msg_t,
                                          preferred_element_type=jnp.float32)
                                  + bo_ref[layer])
        return jnp.concatenate([f_tgt, f_src], axis=1)

    f = self_attn(f, 0)      # sattn1
    f = cross_attn(f, 1)     # cattn (src updated first, then tgt vs. updated src)
    f = self_attn(f, 2)      # sattn2

    # final_proj; the score scale 1/sqrt(D) is folded into fw/fb (D^-1/4 each)
    f = jnp.dot(fw_ref[...], f.astype(jnp.bfloat16),
                preferred_element_type=jnp.float32) + fb_ref[...]

    # ---- score matrix + log_optimal_transport (SuperGlue Sinkhorn) ----
    f16 = f.astype(jnp.bfloat16)
    scores = jnp.einsum('dn,dm->nm', f16[:, colp:], f16[:, :colp],
                        preferred_element_type=jnp.float32)[:rowp, :]   # (rowp, colp)

    alpha = alpha_ref[0, 0]
    ri = lax.broadcasted_iota(jnp.int32, (rowp, colp), 0)
    ci = lax.broadcasted_iota(jnp.int32, (rowp, colp), 1)
    inner = (ri < n) & (ci < m)
    valid = (ri <= n) & (ci <= m)
    couplings = jnp.where(valid, jnp.where(inner, scores, alpha), jnp.float32(_NEG))

    norm = jnp.float32(-np.log(n + m))
    riN = lax.broadcasted_iota(jnp.int32, (rowp, 1), 0)
    ciM = lax.broadcasted_iota(jnp.int32, (1, colp), 1)
    log_mu = jnp.where(riN < n, norm, jnp.float32(np.log(m)) + norm)   # (rowp, 1)
    log_nu = jnp.where(ciM < m, norm, jnp.float32(np.log(n)) + norm)   # (1, colp)
    row_valid = riN <= n
    col_valid = ciM <= m

    def _lse(z, axis):
        mx = jnp.max(z, axis=axis, keepdims=True)
        return mx + jnp.log(jnp.sum(jnp.exp(z - mx), axis=axis, keepdims=True))

    u = jnp.zeros((rowp, 1), jnp.float32)
    v = jnp.zeros((1, colp), jnp.float32)
    for _ in range(iters):
        u = jnp.where(row_valid, log_mu - _lse(couplings + v, axis=1), 0.0)
        v = jnp.where(col_valid, log_nu - _lse(couplings + u, axis=0), 0.0)

    z_ref[...] = couplings + u + v - norm


def gnn_sinkhorn(params, src_node_c, tgt_node_c, *, num_heads, iters):
    n = int(src_node_c.shape[0])
    m = int(tgt_node_c.shape[0])
    D = int(params["enc_w2"].shape[0])
    dh = D // num_heads
    rowp = _round_up(n + 1, 8)
    colp = max(128, _round_up(m + 1, 128))     # tgt segment / coupling width
    srcp = max(128, _round_up(n + 1, 128))     # src segment width (lane aligned)
    npad = colp + srcp

    # lane-aligned column layout: [tgt nodes | pad to colp | src nodes | pad]
    coords_cf = jnp.zeros((8, npad), jnp.float32)
    coords_cf = coords_cf.at[:3, :m].set(tgt_node_c.T.astype(jnp.float32))
    coords_cf = coords_cf.at[:3, colp:colp + n].set(src_node_c.T.astype(jnp.float32))
    coords_cf = coords_cf.astype(jnp.bfloat16)

    layers = ("sattn1", "cattn", "sattn2")
    q_scale = 1.0 / float(np.sqrt(dh))         # fold attention scale into Q
    aqkv = jnp.stack([jnp.concatenate(
        [params[l]["q"][0] * q_scale, params[l]["k"][0], params[l]["v"][0]], axis=0)
        for l in layers]).astype(jnp.bfloat16)                       # (3, 3D, D)
    bqkv = jnp.stack([jnp.concatenate(
        [params[l]["q"][1] * q_scale, params[l]["k"][1], params[l]["v"][1]], axis=0)
        for l in layers]).astype(jnp.float32)                        # (3, 3D, 1)
    ao = jnp.stack([params[l]["o"][0] for l in layers]).astype(jnp.bfloat16)  # (3, D, D)
    bo = jnp.stack([params[l]["o"][1] for l in layers]).astype(jnp.float32)   # (3, D, 1)

    ew1 = params["enc_w1"].astype(jnp.bfloat16)
    eb1 = params["enc_b1"].astype(jnp.float32)
    ew2 = params["enc_w2"].astype(jnp.bfloat16)
    eb2 = params["enc_b2"].astype(jnp.float32)
    s_scale = float(D) ** -0.25                # fold score 1/sqrt(D) into final_proj
    fw = (params["final_w"] * s_scale).astype(jnp.bfloat16)
    fb = (params["final_b"] * s_scale).astype(jnp.float32)
    alpha = jnp.reshape(jnp.asarray(params["bin_score"], jnp.float32), (1, 1))

    in_arrays = (coords_cf, ew1, eb1, ew2, eb2, aqkv, bqkv, ao, bo, fw, fb, alpha)
    wbytes = sum(int(a.size) * a.dtype.itemsize for a in in_arrays)
    seg = max(colp, srcp)
    act_bytes = (4 * num_heads * seg * seg * 4        # logits + softmax temporaries
                 + 10 * D * npad * 4                  # feature / projection slabs
                 + 4 * rowp * colp * 4)               # score / sinkhorn working set
    vmem_limit = int(min(48 << 20, max(6 << 20, 2 * (wbytes + act_bytes))))

    flops = (2 * D * 8 * npad + 2 * D * D * npad                      # encoder MLP
             + 3 * 2 * (3 * D) * D * npad + 2 * (3 * D) * D * srcp    # fused QKV projs
             + 4 * 2 * D * D * npad                                   # out / final projs
             + 2 * 4 * D * (colp * colp + srcp * srcp)                # self-attn
             + 2 * 4 * D * srcp * colp                                # cross-attn
             + 2 * D * srcp * colp                                    # score matmul
             + iters * 8 * rowp * colp)                               # sinkhorn
    transc = (2 * num_heads * (colp * colp + srcp * srcp)
              + 2 * num_heads * srcp * colp + iters * 2 * rowp * colp)
    bytes_acc = wbytes + rowp * colp * 4

    vmem_spec = pl.BlockSpec(memory_space=pltpu.MemorySpace.VMEM)
    z = pl.pallas_call(
        functools.partial(_gnn_sinkhorn_kernel, n=n, m=m, colp=colp, srcp=srcp,
                          rowp=rowp, num_heads=num_heads, iters=iters),
        out_shape=jax.ShapeDtypeStruct((rowp, colp), jnp.float32),
        in_specs=[vmem_spec] * 11
                 + [pl.BlockSpec(memory_space=pltpu.MemorySpace.SMEM)],
        out_specs=vmem_spec,
        cost_estimate=pl.CostEstimate(flops=int(flops), transcendentals=int(transc),
                                      bytes_accessed=int(bytes_acc)),
        compiler_params=pltpu.CompilerParams(vmem_limit_bytes=vmem_limit),
    )(*in_arrays)
    # TODO(synk): for multi-pair batches add a leading "parallel" batch grid axis
    # so v7x's second TensorCore is used; a single pair is inherently sequential.
    return z[:n + 1, :m + 1]


# ----------------------------------------------------------------------------
# Plain-JAX glue
# ----------------------------------------------------------------------------
def group_points(pcd_id, num_nodes, neighbor_sel):
    """Emulates grouping.grouping_wrapper: per node, up to neighbor_sel point
    indices whose nearest node is that node; missing slots are -1."""
    P = pcd_id.shape[0]
    node_ids = jnp.arange(num_nodes, dtype=jnp.int32)[:, None]     # (Nn, 1)
    match = pcd_id[None, :] == node_ids                            # (Nn, P)
    point_idx = jnp.arange(P, dtype=jnp.int32)[None, :]
    key = jnp.where(match, point_idx, point_idx + P)
    order = jnp.argsort(key, axis=1)[:, :neighbor_sel].astype(jnp.int32)
    valid = jnp.take_along_axis(match, order, axis=1)
    return jnp.where(valid, order, -1).astype(jnp.int32)


# ----------------------------------------------------------------------------
# Full forward (mirrors RoughMatchingModel.forward; ape=False, acn=False)
# ----------------------------------------------------------------------------
def rough_matching_forward(params, batch, *, num_heads, neighbor_sel,
                           sinkhorn_iters, min_coarse_corr):
    len_src_c = batch["stack_lengths"][0][0]
    rot, trans = batch["rot"], batch["trans"]
    pcd_c = batch["points"][0]
    src_pcd_c, tgt_pcd_c = pcd_c[:len_src_c], pcd_c[len_src_c:]
    src_pcd_raw, tgt_pcd_raw = batch["src_pcd_raw"], batch["tgt_pcd_raw"]
    _src_pcd_raw_tsfm = (rot @ src_pcd_raw.T + trans).T   # parity w/ reference (unused)

    len_node_c = batch["stack_lengths"][-1][0]
    node_c = batch["points"][-1]
    src_node_c, tgt_node_c = node_c[:len_node_c], node_c[len_node_c:]

    # 1-NN point -> node for BOTH clouds in a single fused Pallas call
    src_pcd_id, tgt_pcd_id = knn_pair(src_pcd_c, tgt_pcd_c, src_node_c, tgt_node_c)

    # grouping into fixed-size patches (glue, emulates the CUDA grouping op)
    src_patch = group_points(src_pcd_id, src_node_c.shape[0], neighbor_sel)
    tgt_patch = group_points(tgt_pcd_id, tgt_node_c.shape[0], neighbor_sel)
    _src_val_mask = (src_patch < 0).astype(jnp.int32)
    _tgt_val_mask = (tgt_patch < 0).astype(jnp.int32)
    src_patch = jnp.where(src_patch < 0, 0, src_patch)
    tgt_patch = jnp.where(tgt_patch < 0, 0, tgt_patch)

    scores0 = gnn_sinkhorn(params, src_node_c, tgt_node_c,
                           num_heads=num_heads, iters=sinkhorn_iters)
    scores = scores0[None]                                   # (1, N+1, M+1)

    # TODO(synk): the threshold-decay while-loop produces dynamic output shapes;
    # replaced by a fixed-size top-k (k = min_coarse_corr) correspondence pick.
    n, m = int(src_node_c.shape[0]), int(tgt_node_c.shape[0])
    conf = jnp.exp(scores0[:n, :m])
    vals, flat_idx = lax.top_k(conf.reshape(-1), min_coarse_corr)
    node_corr = jnp.stack([flat_idx // m, flat_idx % m], axis=1)
    node_corr_conf = vals

    src_node_sel = node_corr[:, 0]
    tgt_node_sel = node_corr[:, 1]
    src_pcd_sel = src_patch[src_node_sel, :].reshape(-1)
    tgt_pcd_sel = tgt_patch[tgt_node_sel, :].reshape(-1)
    num_corr = node_corr.shape[0]
    src_pcd_sel_c = src_pcd_raw[src_pcd_sel, :].reshape(num_corr, neighbor_sel, -1)
    tgt_pcd_sel_c = tgt_pcd_raw[tgt_pcd_sel, :].reshape(num_corr, neighbor_sel, -1)

    return (src_pcd_sel_c.reshape(-1, 3), tgt_pcd_sel_c.reshape(-1, 3),
            scores, node_corr, node_corr_conf, src_pcd_sel, tgt_pcd_sel)


# ----------------------------------------------------------------------------
# Deterministic parameter init
# ----------------------------------------------------------------------------
def init_params(key, d):
    def lin(k, dout, din):
        kw, kb = jax.random.split(k)
        return (jax.random.normal(kw, (dout, din), jnp.float32) * 0.1,
                jax.random.normal(kb, (dout, 1), jnp.float32) * 0.01)

    def attn(k):
        kq, kk, kv, ko = jax.random.split(k, 4)
        return {"q": lin(kq, d, d), "k": lin(kk, d, d),
                "v": lin(kv, d, d), "o": lin(ko, d, d)}

    keys = jax.random.split(key, 6)
    enc_w1, enc_b1 = lin(keys[0], d, 8)
    enc_w2, enc_b2 = lin(keys[1], d, d)
    fw, fb = lin(keys[2], d, d)
    return {"enc_w1": enc_w1, "enc_b1": enc_b1,
            "enc_w2": enc_w2, "enc_b2": enc_b2,
            "sattn1": attn(keys[3]), "cattn": attn(keys[4]),
            "sattn2": attn(keys[5]),
            "final_w": fw, "final_b": fb,
            "bin_score": jnp.float32(1.0)}


# ----------------------------------------------------------------------------
if __name__ == "__main__":
    D = 64                 # gnn_feats_dim
    H = 4                  # num_head
    NEIGHBOR_SEL = 8
    SINKHORN_ITERS = 5
    MIN_COARSE_CORR = 16
    P_SRC, P_TGT = 128, 128
    N_SRC, N_TGT = 32, 32

    key = jax.random.PRNGKey(0)
    k_src, k_tgt, k_par = jax.random.split(key, 3)
    src_pcd = jax.random.normal(k_src, (P_SRC, 3), jnp.float32)
    tgt_pcd = jax.random.normal(k_tgt, (P_TGT, 3), jnp.float32)
    src_nodes = src_pcd[::P_SRC // N_SRC]
    tgt_nodes = tgt_pcd[::P_TGT // N_TGT]

    batch = {
        "stack_lengths": [(P_SRC, P_TGT), (N_SRC, N_TGT)],
        "points": [jnp.concatenate([src_pcd, tgt_pcd], axis=0),
                   jnp.concatenate([src_nodes, tgt_nodes], axis=0)],
        "rot": jnp.eye(3, dtype=jnp.float32),
        "trans": jnp.zeros((3, 1), jnp.float32),
        "src_pcd_raw": src_pcd,
        "tgt_pcd_raw": tgt_pcd,
    }
    params = init_params(k_par, D)

    out = rough_matching_forward(params, batch, num_heads=H,
                                 neighbor_sel=NEIGHBOR_SEL,
                                 sinkhorn_iters=SINKHORN_ITERS,
                                 min_coarse_corr=MIN_COARSE_CORR)
    jax.block_until_ready(out)
    print("KERNEL_OK")
</pallas_src>

<mosaic_0001>
module attributes {stable_mosaic.version = 11 : i64} {
  func.func @_knn_pair_kernel(%arg0: i32, %arg1: memref<8x256xf32, #tpu.memory_space<vmem>>, %arg2: memref<64x8xf32, #tpu.memory_space<vmem>>, %arg3: memref<8x256xi32, #tpu.memory_space<vmem>>) attributes {dimension_semantics = [#tpu.dimension_semantics<parallel>], iteration_bounds = array<i64: 1>, scalar_prefetch = 0 : i64, scratch_operands = 0 : i64, tpu.core_type = #tpu.core_type<tc>, window_params = [{transform_indices = @transform_0, window_bounds = array<i64: 8, 256>}, {pipeline_mode = #tpu.pipeline_mode<synchronous>, transform_indices = @transform_1, window_bounds = array<i64: 64, 8>}, {transform_indices = @transform_2, window_bounds = array<i64: 8, 256>}]} {
    %c0 = arith.constant 0 : index
    %c0_0 = arith.constant 0 : index
    %0 = vector.load %arg1[%c0, %c0_0] : memref<8x256xf32, #tpu.memory_space<vmem>>, vector<8x256xf32>
    %c0_1 = arith.constant 0 : index
    %c0_2 = arith.constant 0 : index
    %1 = vector.load %arg2[%c0_1, %c0_2] : memref<64x8xf32, #tpu.memory_space<vmem>>, vector<64x8xf32>
    %cst = arith.constant dense<0.000000e+00> : vector<64x256xf32>
    %2 = tpu.matmul %1, %0, %cst {dimension_numbers = #tpu.dot_dimension_numbers<[1], [0], [0], [1], [0, 0, 1, 1], [], []>} : vector<64x8xf32>, vector<8x256xf32>, vector<64x256xf32> -> vector<64x256xf32>
    %3 = tpu.iota {dimensions = array<i32: 0>} : vector<64x256xi32>
    %c256_i32 = arith.constant 256 : i32
    %4 = arith.muli %arg0, %c256_i32 : i32
    %5 = tpu.iota {dimensions = array<i32: 1>} : vector<64x256xi32>
    %6 = vector.broadcast %4 : i32 to vector<64x256xi32>
    %7 = arith.addi %6, %5 : vector<64x256xi32>
    %c128_i32 = arith.constant 128 : i32
    %8 = vector.broadcast %c128_i32 : i32 to vector<64x256xi32>
    %9 = arith.cmpi slt, %7, %8 : vector<64x256xi32>
    %c32_i32 = arith.constant 32 : i32
    %10 = vector.broadcast %c32_i32 : i32 to vector<64x256xi32>
    %11 = arith.cmpi slt, %3, %10 : vector<64x256xi32>
    %12 = arith.andi %9, %11 : vector<64x256xi1>
    %cst_3 = arith.constant dense<true> : vector<64x256xi1>
    %13 = arith.xori %9, %cst_3 : vector<64x256xi1>
    %c32_i32_4 = arith.constant 32 : i32
    %14 = vector.broadcast %c32_i32_4 : i32 to vector<64x256xi32>
    %15 = arith.cmpi sge, %3, %14 : vector<64x256xi32>
    %16 = arith.andi %13, %15 : vector<64x256xi1>
    %c64_i32 = arith.constant 64 : i32
    %17 = vector.broadcast %c64_i32 : i32 to vector<64x256xi32>
    %18 = arith.cmpi slt, %3, %17 : vector<64x256xi32>
    %19 = arith.andi %16, %18 : vector<64x256xi1>
    %20 = arith.ori %12, %19 : vector<64x256xi1>
    %cst_5 = arith.constant 1.000000e+30 : f32
    %21 = vector.broadcast %cst_5 : f32 to vector<64x256xf32>
    %22 = arith.select %20, %2, %21 : vector<64x256xi1>, vector<64x256xf32>
    %cst_6 = arith.constant dense<0x7F800000> : vector<256xf32>
    %23 = vector.multi_reduction <minimumf>, %22, %cst_6 [0] : vector<64x256xf32> to vector<256xf32>
    %24 = vector.shape_cast %23 : vector<256xf32> to vector<1x256xf32>
    %25 = vector.broadcast %24 : vector<1x256xf32> to vector<64x256xf32>
    %26 = arith.cmpf ole, %22, %25 : vector<64x256xf32>
    %c64_i32_7 = arith.constant 64 : i32
    %27 = vector.broadcast %c64_i32_7 : i32 to vector<64x256xi32>
    %28 = arith.select %26, %3, %27 : vector<64x256xi1>, vector<64x256xi32>
    %cst_8 = arith.constant dense<2147483647> : vector<256xi32>
    %29 = vector.multi_reduction <minsi>, %28, %cst_8 [0] : vector<64x256xi32> to vector<256xi32>
    %30 = vector.shape_cast %29 : vector<256xi32> to vector<1x256xi32>
    %c256_i32_9 = arith.constant 256 : i32
    %31 = arith.muli %arg0, %c256_i32_9 : i32
    %32 = tpu.iota {dimensions = array<i32: 1>} : vector<1x256xi32>
    %33 = vector.broadcast %31 : i32 to vector<1x256xi32>
    %34 = arith.addi %33, %32 : vector<1x256xi32>
    %c128_i32_10 = arith.constant 128 : i32
    %35 = vector.broadcast %c128_i32_10 : i32 to vector<1x256xi32>
    %36 = arith.cmpi slt, %34, %35 : vector<1x256xi32>
    %c32_i32_11 = arith.constant 32 : i32
    %37 = vector.broadcast %c32_i32_11 : i32 to vector<1x256xi32>
    %38 = arith.subi %30, %37 : vector<1x256xi32>
    %39 = arith.select %36, %30, %38 : vector<1x256xi1>, vector<1x256xi32>
    %40 = vector.shape_cast %39 : vector<1x256xi32> to vector<1x256xi32>
    %41 = vector.broadcast %40 : vector<1x256xi32> to vector<8x256xi32>
    %c0_12 = arith.constant 0 : index
    %c0_13 = arith.constant 0 : index
    %42 = vector.load %arg3[%c0_12, %c0_13] : memref<8x256xi32, #tpu.memory_space<vmem>>, vector<8x256xi32>
    tpu.vector_store %arg3[%c0_12, %c0_13], %41 {strides = array<i32>} : memref<8x256xi32, #tpu.memory_space<vmem>>, vector<8x256xi32>,
    return
  }
  func.func @transform_0(%arg0: i32) -> (i32, i32) {
    %c0_i32 = arith.constant 0 : i32
    %c0_i32_0 = arith.constant 0 : i32
    return %c0_i32, %arg0 : i32, i32
  }
  func.func @transform_1(%arg0: i32) -> (i32, i32) {
    %c0_i32 = arith.constant 0 : i32
    %c0_i32_0 = arith.constant 0 : i32
    %c0_i32_1 = arith.constant 0 : i32
    return %c0_i32, %c0_i32_0 : i32, i32
  }
  func.func @transform_2(%arg0: i32) -> (i32, i32) {
    %c0_i32 = arith.constant 0 : i32
    %c0_i32_0 = arith.constant 0 : i32
    return %c0_i32, %arg0 : i32, i32
  }
}

</mosaic_0001>

<llo_original>
// kernel: tpu_custom_call.1
$region0: #{tpu_custom_call.1}
  #allocation0 [shape = 'u32[]', space=smem, size = 0x4, offset = 0x4, fixed_abs, tag = 'smem constant byte address 0x4 - core index']
  #allocation1 [shape = 'u32[144,128]{1,0:T(1,128)}', space=vmem, size = 0x12000, scoped, tag = 'internal scratch']
  %s0 = inlined_call_operand.vmem [shape: f32[8,256], index: 0, kind: input, shape index: {}]
  %s1 = inlined_call_operand.vmem [shape: f32[64,8], index: 1, kind: input, shape index: {}]
  %s2 = inlined_call_operand.hbm [shape: s32[8,256], index: 2, kind: output, shape index: {}]
  %s3 = sld [smem:[#allocation0]]
  $region18: #{tpu_custom_call.1} parent=0
    _
  %s5 = ssub.s32 1, %s3
  %s6 = scalar_select 0, %s5, %s3
  $region1: #{tpu_custom_call.1} parent=0
    #allocation2 [shape = 'u8[8192]{0}', space=vmem, size = 0x2000, scoped, tag = 'output window, operand 0, single buffered']
    #allocation3 [shape = 's32[1]{0}', space=sflag, size = 0x4, scoped, tag = 'scoped memory for tpu_custom_call.1']
    %7 = vsyncpa [#allocation3], 0
    // Predicated region
    $region2: #{tpu_custom_call.1} parent=1 // pred_check
      _
    $region3: #{tpu_custom_call.1} parent=1 // pred_check_branch
      %9 = sbr.rel (0) target = $region5
    $region4: #{tpu_custom_call.1} parent=1 // pred_region
      _
    $region5: #{tpu_custom_call.1} parent=1 // pred_fallthru
      _
    // Predicated region
    $region6: #{tpu_custom_call.1} parent=1 // pred_check
      _
    $region7: #{tpu_custom_call.1} parent=1 // pred_check_branch
      %11 = sbr.rel (0) target = $region9
    $region8: #{tpu_custom_call.1} parent=1 // pred_region
      _
    $region9: #{tpu_custom_call.1} parent=1 // pred_fallthru
      _
    %v12 = vld [vmem:[%s0] sm:$0xff]
    %v13 = vld [vmem:[%s0 + $0x8] sm:$0xff]
    %v14 = vld [vmem:[%s1] sm:$0xff]
    %v15 = vld [vmem:[%s1 + $0x8] sm:$0xff]
    %v16 = vld [vmem:[%s1 + $0x10] sm:$0xff]
    %v17 = vld [vmem:[%s1 + $0x18] sm:$0xff]
    %v18 = vld [vmem:[%s1 + $0x20] sm:$0xff]
    %v19 = vld [vmem:[%s1 + $0x28] sm:$0xff]
    %v20 = vld [vmem:[%s1 + $0x30] sm:$0xff]
    %v21 = vld [vmem:[%s1 + $0x38] sm:$0xff]
    %vm22 = vcmask 64512
    %v24 = vsel %vm22, %v14, 0
    %v27 = vsel %vm22, %v15, 0
    %v30 = vsel %vm22, %v16, 0
    %v33 = vsel %vm22, %v17, 0
    %v36 = vsel %vm22, %v18, 0
    %v39 = vsel %vm22, %v19, 0
    %v42 = vsel %vm22, %v20, 0
    %v45 = vsel %vm22, %v21, 0
    %47 = vmatprep.subr.mxu0 0.0
    %48 = vmatpush1.msra.mxu0 0.0
    %49 = vmatprep.subr.mxu0 0.0
    %50 = vmatpush1.msra.mxu0 0.0
    %51 = vmatprep.subr.mxu0 0.0
    %52 = vmatpush1.msra.mxu0 0.0
    %53 = vmatprep.subr.mxu0 0.0
    %54 = vmatpush1.msra.mxu0 0.0
    %55 = vmatprep.subr.mxu0 0.0
    %56 = vmatpush1.msra.mxu0 0.0
    %57 = vmatprep.subr.mxu0 0.0
    %58 = vmatpush1.msra.mxu0 0.0
    %59 = vmatprep.subr.mxu0 0.0
    %60 = vmatpush1.msra.mxu0 0.0
    %61 = vmatprep.subr.mxu0 0.0
    %62 = vmatpush1.msra.mxu0 0.0
    %63 = vmatprep.subr.mxu0 0.0
    %64 = vmatpush1.msra.mxu0 0.0
    %65 = vmatprep.subr.mxu0 0.0
    %66 = vmatpush1.msra.mxu0 0.0
    %67 = vmatprep.subr.mxu0 0.0
    %68 = vmatpush1.msra.mxu0 0.0
    %69 = vmatprep.subr.mxu0 0.0
    %70 = vmatpush1.msra.mxu0 0.0
    %71 = vmatprep.subr.mxu0 0.0
    %72 = vmatpush1.msra.mxu0 0.0
    %73 = vmatprep.subr.mxu0 0.0
    %74 = vmatpush1.msra.mxu0 0.0
    %75 = vmatprep.subr.mxu0 0.0
    %76 = vmatpush1.msra.mxu0 0.0
    %77 = vmatprep.subr.mxu0 %v13
    %78 = vmatpush1.msra.mxu0 %v12
    %79 = vmatprep.subr.mxu0 0.0
    %80 = vmatpush2.msra.mxu0 0.0
    %81 = vmatprep.subr.mxu0 0.0
    %82 = vmatpush2.msra.mxu0 0.0
    %83 = vmatprep.subr.mxu0 0.0
    %84 = vmatpush2.msra.mxu0 0.0
    %85 = vmatprep.subr.mxu0 0.0
    %86 = vmatpush2.msra.mxu0 0.0
    %87 = vmatprep.subr.mxu0 0.0
    %88 = vmatpush2.msra.mxu0 0.0
    %89 = vmatprep.subr.mxu0 0.0
    %90 = vmatpush2.msra.mxu0 0.0
    %91 = vmatprep.subr.mxu0 0.0
    %92 = vmatpush2.msra.mxu0 0.0
    %93 = vmatprep.subr.mxu0 0.0
    %94 = vmatpush2.msra.mxu0 0.0
    %95 = vmatprep.subr.mxu0 0.0
    %96 = vmatpush2.msra.mxu0 0.0
    %97 = vmatprep.subr.mxu0 0.0
    %98 = vmatpush2.msra.mxu0 0.0
    %99 = vmatprep.subr.mxu0 0.0
    %100 = vmatpush2.msra.mxu0 0.0
    %101 = vmatprep.subr.mxu0 0.0
    %102 = vmatpush2.msra.mxu0 0.0
    %103 = vmatprep.subr.mxu0 0.0
    %104 = vmatpush2.msra.mxu0 0.0
    %105 = vmatprep.subr.mxu0 0.0
    %106 = vmatpush2.msra.mxu0 0.0
    %107 = vmatprep.subr.mxu0 0.0
    %108 = vmatpush2.msra.mxu0 0.0
    %109 = vmatprep.subr.mxu0 0.0
    %110 = vmatpush2.msra.mxu0 0.0
    %111 = vmatprep.mubr.f32.mxu0 0.0
    %112 = vmatmul.mubr.f32.gmra.mxu0 %v24
    %v113 = vpop.f32.mrf.mxu0
    %v114 = vadd.f32 0.0, %v113
    %v115 = vpop.f32.mrf.mxu0
    %v116 = vadd.f32 0.0, %v115
    %117 = vmatprep.mubr.f32.mxu0 0.0
    %118 = vmatmul.mubr.f32.gmra.mxu0 %v27
    %v119 = vpop.f32.mrf.mxu0
    %v120 = vadd.f32 0.0, %v119
    %v121 = vpop.f32.mrf.mxu0
    %v122 = vadd.f32 0.0, %v121
    %123 = vmatprep.mubr.f32.mxu0 0.0
    %124 = vmatmul.mubr.f32.gmra.mxu0 %v30
    %v125 = vpop.f32.mrf.mxu0
    %v126 = vadd.f32 0.0, %v125
    %v127 = vpop.f32.mrf.mxu0
    %v128 = vadd.f32 0.0, %v127
    %129 = vmatprep.mubr.f32.mxu0 0.0
    %130 = vmatmul.mubr.f32.gmra.mxu0 %v33
    %v131 = vpop.f32.mrf.mxu0
    %v132 = vadd.f32 0.0, %v131
    %v133 = vpop.f32.mrf.mxu0
    %v134 = vadd.f32 0.0, %v133
    %135 = vmatprep.mubr.f32.mxu0 0.0
    %136 = vmatmul.mubr.f32.gmra.mxu0 %v36
    %v137 = vpop.f32.mrf.mxu0
    %v138 = vadd.f32 0.0, %v137
    %v139 = vpop.f32.mrf.mxu0
    %v140 = vadd.f32 0.0, %v139
    %141 = vmatprep.mubr.f32.mxu0 0.0
    %142 = vmatmul.mubr.f32.gmra.mxu0 %v39
    %v143 = vpop.f32.mrf.mxu0
    %v144 = vadd.f32 0.0, %v143
    %v145 = vpop.f32.mrf.mxu0
    %v146 = vadd.f32 0.0, %v145
    %147 = vmatprep.mubr.f32.mxu0 0.0
    %148 = vmatmul.mubr.f32.gmra.mxu0 %v42
    %v149 = vpop.f32.mrf.mxu0
    %v150 = vadd.f32 0.0, %v149
    %v151 = vpop.f32.mrf.mxu0
    %v152 = vadd.f32 0.0, %v151
    %153 = vmatprep.mubr.f32.mxu0 0.0
    %154 = vmatmul.mubr.f32.gmra.mxu0 %v45
    %v155 = vpop.f32.mrf.mxu0
    %v156 = vadd.f32 0.0, %v155
    %v157 = vpop.f32.mrf.mxu0
    %v158 = vadd.f32 0.0, %v157
    %159 = vdwg.mxu0
    %v160 = vlaneseq
    %v161 = vshrl.u32 %v160, 7
    %v162 = vadd.s32 %v161, 8
    %v163 = vadd.s32 %v161, 16
    %v164 = vadd.s32 %v161, 24
    %v165 = vadd.s32 %v161, 32
    %v166 = vadd.s32 %v161, 40
    %v167 = vadd.s32 %v161, 48
    %v168 = vadd.s32 %v161, 56
    %s169 = smul.u32 0, 256
    %v170 = vlaneseq
    %v171 = vand.u32 %v170, 127
    %v172 = vadd.s32 %v171, 128
    %v173 = vstv %s169
    %v174 = vadd.s32 %v173, %v171
    %v175 = vadd.s32 %v173, %v172
    %vm176 = vcmp.lt.s32.totalorder %v174, 128
    %vm177 = vcmp.lt.s32.totalorder %v175, 128
    %vm178 = vcmp.lt.s32.totalorder %v161, 32
    %vm179 = vcmp.lt.s32.totalorder %v162, 32
    %vm180 = vcmp.lt.s32.totalorder %v163, 32
    %vm181 = vcmp.lt.s32.totalorder %v164, 32
    %vm182 = vcmp.lt.s32.totalorder %v165, 32
    %vm183 = vcmp.lt.s32.totalorder %v166, 32
    %vm184 = vcmp.lt.s32.totalorder %v167, 32
    %vm185 = vcmp.lt.s32.totalorder %v168, 32
    %vm186 = vmand %vm176, %vm178
    %vm187 = vmand %vm177, %vm178
    %vm188 = vmand %vm176, %vm179
    %vm189 = vmand %vm177, %vm179
    %vm190 = vmand %vm176, %vm180
    %vm191 = vmand %vm177, %vm180
    %vm192 = vmand %vm176, %vm181
    %vm193 = vmand %vm177, %vm181
    %vm194 = vmand %vm176, %vm182
    %vm195 = vmand %vm177, %vm182
    %vm196 = vmand %vm176, %vm183
    %vm197 = vmand %vm177, %vm183
    %vm198 = vmand %vm176, %vm184
    %vm199 = vmand %vm177, %vm184
    %vm200 = vmand %vm176, %vm185
    %vm201 = vmand %vm177, %vm185
    %vm202 = vmxor %vm176, 1
    %vm203 = vmxor %vm177, 1
    %vm204 = vcmp.ge.s32.totalorder %v161, 32
    %vm205 = vcmp.ge.s32.totalorder %v162, 32
    %vm206 = vcmp.ge.s32.totalorder %v163, 32
    %vm207 = vcmp.ge.s32.totalorder %v164, 32
    %vm208 = vcmp.ge.s32.totalorder %v165, 32
    %vm209 = vcmp.ge.s32.totalorder %v166, 32
    %vm210 = vcmp.ge.s32.totalorder %v167, 32
    %vm211 = vcmp.ge.s32.totalorder %v168, 32
    %vm212 = vmand %vm202, %vm204
    %vm213 = vmand %vm203, %vm204
    %vm214 = vmand %vm202, %vm205
    %vm215 = vmand %vm203, %vm205
    %vm216 = vmand %vm202, %vm206
    %vm217 = vmand %vm203, %vm206
    %vm218 = vmand %vm202, %vm207
    %vm219 = vmand %vm203, %vm207
    %vm220 = vmand %vm202, %vm208
    %vm221 = vmand %vm203, %vm208
    %vm222 = vmand %vm202, %vm209
    %vm223 = vmand %vm203, %vm209
    %vm224 = vmand %vm202, %vm210
    %vm225 = vmand %vm203, %vm210
    %vm226 = vmand %vm202, %vm211
    %vm227 = vmand %vm203, %vm211
    %vm228 = vcmp.lt.s32.totalorder %v161, 64
    %vm229 = vcmp.lt.s32.totalorder %v162, 64
    %vm230 = vcmp.lt.s32.totalorder %v163, 64
    %vm231 = vcmp.lt.s32.totalorder %v164, 64
    %vm232 = vcmp.lt.s32.totalorder %v165, 64
    %vm233 = vcmp.lt.s32.totalorder %v166, 64
    %vm234 = vcmp.lt.s32.totalorder %v167, 64
    %vm235 = vcmp.lt.s32.totalorder %v168, 64
    %vm236 = vmand %vm212, %vm228
    %vm237 = vmand %vm213, %vm228
    %vm238 = vmand %vm214, %vm229
    %vm239 = vmand %vm215, %vm229
    %vm240 = vmand %vm216, %vm230
    %vm241 = vmand %vm217, %vm230
    %vm242 = vmand %vm218, %vm231
    %vm243 = vmand %vm219, %vm231
    %vm244 = vmand %vm220, %vm232
    %vm245 = vmand %vm221, %vm232
    %vm246 = vmand %vm222, %vm233
    %vm247 = vmand %vm223, %vm233
    %vm248 = vmand %vm224, %vm234
    %vm249 = vmand %vm225, %vm234
    %vm250 = vmand %vm226, %vm235
    %vm251 = vmand %vm227, %vm235
    %vm252 = vmor %vm186, %vm236
    %vm253 = vmor %vm187, %vm237
    %vm254 = vmor %vm188, %vm238
    %vm255 = vmor %vm189, %vm239
    %vm256 = vmor %vm190, %vm240
    %vm257 = vmor %vm191, %vm241
    %vm258 = vmor %vm192, %vm242
    %vm259 = vmor %vm193, %vm243
    %vm260 = vmor %vm194, %vm244
    %vm261 = vmor %vm195, %vm245
    %vm262 = vmor %vm196, %vm246
    %vm263 = vmor %vm197, %vm247
    %vm264 = vmor %vm198, %vm248
    %vm265 = vmor %vm199, %vm249
    %vm266 = vmor %vm200, %vm250
    %vm267 = vmor %vm201, %vm251
    %v268 = vsel %vm252, %v114, 1e+30
    %v269 = vsel %vm253, %v116, 1e+30
    %v270 = vsel %vm254, %v120, 1e+30
    %v271 = vsel %vm255, %v122, 1e+30
    %v272 = vsel %vm256, %v126, 1e+30
    %v273 = vsel %vm257, %v128, 1e+30
    %v274 = vsel %vm258, %v132, 1e+30
    %v275 = vsel %vm259, %v134, 1e+30
    %v276 = vsel %vm260, %v138, 1e+30
    %v277 = vsel %vm261, %v140, 1e+30
    %v278 = vsel %vm262, %v144, 1e+30
    %v279 = vsel %vm263, %v146, 1e+30
    %v280 = vsel %vm264, %v150, 1e+30
    %v281 = vsel %vm265, %v152, 1e+30
    %v282 = vsel %vm266, %v156, 1e+30
    %v283 = vsel %vm267, %v158, 1e+30
    %v284 = vmin.f32 %v268, %v272
    %v285 = vmin.f32 %v270, %v274
    %v286 = vmin.f32 %v284, %v276
    %v287 = vmin.f32 %v285, %v278
    %v288 = vmin.f32 %v286, %v280
    %v289 = vmin.f32 %v287, %v282
    %v290 = vmin.f32 %v288, %v289
    %v291 = vrot.slane %v290, 4
    %v292 = vmin.f32 %v290, %v291
    %v293 = vrot.slane %v292, 2
    %v294 = vmin.f32 %v292, %v293
    %v295 = vrot.slane %v294, 1
    %v296 = vmin.f32 %v294, %v295
    %v297 = vmin.f32 %v269, %v273
    %v298 = vmin.f32 %v271, %v275
    %v299 = vmin.f32 %v297, %v277
    %v300 = vmin.f32 %v298, %v279
    %v301 = vmin.f32 %v299, %v281
    %v302 = vmin.f32 %v300, %v283
    %v303 = vmin.f32 %v301, %v302
    %v304 = vrot.slane %v303, 4
    %v305 = vmin.f32 %v303, %v304
    %v306 = vrot.slane %v305, 2
    %v307 = vmin.f32 %v305, %v306
    %v308 = vrot.slane %v307, 1
    %v309 = vmin.f32 %v307, %v308
    %vm310 = vcmp.le.f32.partialorder %v268, %v296
    %vm311 = vcmp.le.f32.partialorder %v269, %v309
    %vm312 = vcmp.le.f32.partialorder %v270, %v296
    %vm313 = vcmp.le.f32.partialorder %v271, %v309
    %vm314 = vcmp.le.f32.partialorder %v272, %v296
    %vm315 = vcmp.le.f32.partialorder %v273, %v309
    %vm316 = vcmp.le.f32.partialorder %v274, %v296
    %vm317 = vcmp.le.f32.partialorder %v275, %v309
    %vm318 = vcmp.le.f32.partialorder %v276, %v296
    %vm319 = vcmp.le.f32.partialorder %v277, %v309
    %vm320 = vcmp.le.f32.partialorder %v278, %v296
    %vm321 = vcmp.le.f32.partialorder %v279, %v309
    %vm322 = vcmp.le.f32.partialorder %v280, %v296
    %vm323 = vcmp.le.f32.partialorder %v281, %v309
    %vm324 = vcmp.le.f32.partialorder %v282, %v296
    %vm325 = vcmp.le.f32.partialorder %v283, %v309
    %v326 = vsel %vm310, %v161, 64
    %v327 = vsel %vm311, %v161, 64
    %v328 = vsel %vm312, %v162, 64
    %v329 = vsel %vm313, %v162, 64
    %v330 = vsel %vm314, %v163, 64
    %v331 = vsel %vm315, %v163, 64
    %v332 = vsel %vm316, %v164, 64
    %v333 = vsel %vm317, %v164, 64
    %v334 = vsel %vm318, %v165, 64
    %v335 = vsel %vm319, %v165, 64
    %v336 = vsel %vm320, %v166, 64
    %v337 = vsel %vm321, %v166, 64
    %v338 = vsel %vm322, %v167, 64
    %v339 = vsel %vm323, %v167, 64
    %v340 = vsel %vm324, %v168, 64
    %v341 = vsel %vm325, %v168, 64
    %vm342 = vcmp.lt.s32.totalorder %v326, %v330
    %v343 = vsel %vm342, %v326, %v330
    %vm344 = vcmp.lt.s32.totalorder %v328, %v332
    %v345 = vsel %vm344, %v328, %v332
    %vm346 = vcmp.lt.s32.totalorder %v343, %v334
    %v347 = vsel %vm346, %v343, %v334
    %vm348 = vcmp.lt.s32.totalorder %v345, %v336
    %v349 = vsel %vm348, %v345, %v336
    %vm350 = vcmp.lt.s32.totalorder %v347, %v338
    %v351 = vsel %vm350, %v347, %v338
    %vm352 = vcmp.lt.s32.totalorder %v349, %v340
    %v353 = vsel %vm352, %v349, %v340
    %vm354 = vcmp.lt.s32.totalorder %v351, %v353
    %v355 = vsel %vm354, %v351, %v353
    %v356 = vrot.slane %v355, 4
    %vm357 = vcmp.lt.s32.totalorder %v355, %v356
    %v358 = vsel %vm357, %v355, %v356
    %v359 = vrot.slane %v358, 2
    %vm360 = vcmp.lt.s32.totalorder %v358, %v359
    %v361 = vsel %vm360, %v358, %v359
    %v362 = vrot.slane %v361, 1
    %vm363 = vcmp.lt.s32.totalorder %v361, %v362
    %v364 = vsel %vm363, %v361, %v362
    %vm365 = vcmp.lt.s32.totalorder %v327, %v331
    %v366 = vsel %vm365, %v327, %v331
    %vm367 = vcmp.lt.s32.totalorder %v329, %v333
    %v368 = vsel %vm367, %v329, %v333
    %vm369 = vcmp.lt.s32.totalorder %v366, %v335
    %v370 = vsel %vm369, %v366, %v335
    %vm371 = vcmp.lt.s32.totalorder %v368, %v337
    %v372 = vsel %vm371, %v368, %v337
    %vm373 = vcmp.lt.s32.totalorder %v370, %v339
    %v374 = vsel %vm373, %v370, %v339
    %vm375 = vcmp.lt.s32.totalorder %v372, %v341
    %v376 = vsel %vm375, %v372, %v341
    %vm377 = vcmp.lt.s32.totalorder %v374, %v376
    %v378 = vsel %vm377, %v374, %v376
    %v379 = vrot.slane %v378, 4
    %vm380 = vcmp.lt.s32.totalorder %v378, %v379
    %v381 = vsel %vm380, %v378, %v379
    %v382 = vrot.slane %v381, 2
    %vm383 = vcmp.lt.s32.totalorder %v381, %v382
    %v384 = vsel %vm383, %v381, %v382
    %v385 = vrot.slane %v384, 1
    %vm386 = vcmp.lt.s32.totalorder %v384, %v385
    %v387 = vsel %vm386, %v384, %v385
    %v388 = vsub.s32 %v364, 32
    %v389 = vsub.s32 %v387, 32
    %v390 = vsel %vm176, %v364, %v388
    %v391 = vsel %vm177, %v387, %v389
    %392 = vst [vmem:[#allocation2] sm:$0xff] %v390
    %393 = vst [vmem:[#allocation2 + $0x8] sm:$0xff] %v391
    // Predicated region
    $region10: #{tpu_custom_call.1} parent=1 // pred_check
      _
    $region11: #{tpu_custom_call.1} parent=1 // pred_check_branch
      %395 = sbr.rel (0) target = $region13
    $region12: #{tpu_custom_call.1} parent=1 // pred_region
      %s397 = ssub.s32 256, 256
      %398 = vsyncadd [#allocation3], %s397
      %s400 = sshll.u32 [#allocation2], 4
      %s401 = int_to_ptr.vmem [resolvable:$true] %s400
      %403 = dma.vmem_to_hbm [thread:$0]  %s401, 256, %s2, [#allocation3]
    $region13: #{tpu_custom_call.1} parent=1 // pred_fallthru
      _
    // Predicated region
    $region14: #{tpu_custom_call.1} parent=1 // pred_check
      _
    $region15: #{tpu_custom_call.1} parent=1 // pred_check_branch
      %405 = sbr.rel (0) target = $region17
    $region16: #{tpu_custom_call.1} parent=1 // pred_region
      %406 = dma.done [#allocation3], 256
    $region17: #{tpu_custom_call.1} parent=1 // pred_fallthru
      _
    %407 = vsyncpa [#allocation3], 1

</llo_original>
